<compile_context>
chip_gen: v7x
topology: tpu7x:2x2x1
jax: 0.10.0
libtpu: 0.0.40
codegen_flags: <defaults>
</compile_context>

<pallas_src>
import jax
import jax.numpy as jnp
from jax.experimental import pallas as pl
from jax.experimental.pallas import tpu as pltpu


# ----------------------------------------------------------------------------
# Kernel
# ----------------------------------------------------------------------------
def time_embedding_kernel(t_ref, w1_ref, b1_ref, w2_ref, b2_ref, o_ref):
    # linear1 + SiLU.  Recomputed per N-tile of linear2; with n_tiles in
    # {1, num_cores} this is at most one redundant tiny matmul and is far
    # cheaper than making the grid axis sequential.
    h = jnp.dot(t_ref[...], w1_ref[...], preferred_element_type=jnp.float32)
    h = h + b1_ref[...]                      # (1, d_hid) broadcasts over batch rows
    h = h * jax.nn.sigmoid(h)                # SiLU; exp rides the EUP slot

    # linear2 on this grid step's (d_hid, tn) slice of w2 (the dominant DMA).
    y = jnp.dot(h.astype(jnp.bfloat16), w2_ref[...],
                preferred_element_type=jnp.float32)
    o_ref[...] = (y + b2_ref[...]).astype(o_ref.dtype)


# ----------------------------------------------------------------------------
# Chip introspection (safe fallbacks if queries are unavailable)
# ----------------------------------------------------------------------------
def _num_tensorcores():
    try:
        kind = jax.local_devices()[0].device_kind.lower()
    except Exception:
        return 1
    # v7x-class chips expose 2 TensorCores per chip; v5e/v6e have 1.
    return 2 if "v7" in kind else 1


def _vmem_capacity_bytes():
    try:
        return int(pltpu.get_tpu_info().vmem_capacity_bytes)
    except Exception:
        return 64 << 20  # conservative default (v7x per-TensorCore VMEM)


def _pick_tn(d_hid, d_emb, batch, n_cores, vmem_capacity):
    """Lane-aligned N-tile width for w2.

    Prefers an exact per-core split (n_tiles == n_cores) on multi-core chips,
    otherwise a single full-width tile, bounded by the chip's VMEM budget.
    """
    def fits(tn):
        need = (2 * d_hid * tn * 2          # double-buffered bf16 w2 tile
                + d_emb * d_hid * 2         # resident bf16 w1
                + batch * d_emb * 2         # resident bf16 time
                + 2 * d_hid * 4             # biases
                + 2 * batch * tn * 4        # double-buffered f32 output tile
                + 2 * tn * 4                # double-buffered b2 tile
                + (2 << 20))                # compiler scratch slack
        return need <= (vmem_capacity * 3) // 4

    # All multiples of 128 that divide d_hid (largest first); if d_hid is not
    # a multiple of 128 the only legal block is the full width.
    cands = sorted((tn for tn in range(128, d_hid + 1, 128) if d_hid % tn == 0),
                   reverse=True)
    if not cands:
        cands = [d_hid]

    if n_cores > 1:
        target = d_hid // n_cores           # balanced megacore split
        if target in cands and fits(target):
            return target
    for tn in cands:                        # single full-width tile first
        if fits(tn):
            return tn
    return cands[-1]


# ----------------------------------------------------------------------------
# Parameter prep (run ONCE, not per forward call)
# ----------------------------------------------------------------------------
def prepare_time_embedding_params(w1, b1, w2, b2):
    """One-time parameter preparation.

    Expects weights in (in_features, out_features) layout (transpose from the
    PyTorch (out, in) layout is the caller's one-time setup step).  Weights
    are stored in bf16 (halves the dominant HBM stream; MXU-native dtype),
    biases as f32 row vectors.
    """
    d_emb, d_hid = w1.shape
    assert d_hid == 4 * d_emb, "linear1 must map d_emb -> 4*d_emb"
    assert w2.shape == (d_hid, d_hid), "linear2 must map 4*d_emb -> 4*d_emb"
    return {
        "w1": jnp.asarray(w1, jnp.bfloat16),
        "b1": jnp.asarray(b1, jnp.float32).reshape(1, d_hid),
        "w2": jnp.asarray(w2, jnp.bfloat16),
        "b2": jnp.asarray(b2, jnp.float32).reshape(1, d_hid),
    }


# ----------------------------------------------------------------------------
# Forward wrapper
# ----------------------------------------------------------------------------
def time_embedding(time, params):
    """time: (B, d_emb); params: output of prepare_time_embedding_params.

    Returns (B, 4*d_emb) in time.dtype.
    """
    w1, b1, w2, b2 = params["w1"], params["b1"], params["w2"], params["b2"]
    d_emb, d_hid = w1.shape
    B = time.shape[0]
    out_dtype = time.dtype

    # Cast the (tiny) time input to bf16 once, pad batch to a sublane multiple
    # (8) so MXU rows / output stores are unmasked.  Padding rows are sliced
    # off after the call.
    Bp = max(8, ((B + 7) // 8) * 8)
    t = time.astype(jnp.bfloat16)
    if Bp != B:
        t = jnp.pad(t, ((0, Bp - B), (0, 0)))

    n_cores = _num_tensorcores()
    vmem_cap = _vmem_capacity_bytes()
    tn = _pick_tn(d_hid, d_emb, Bp, n_cores, vmem_cap)
    n_tiles = d_hid // tn

    # Scoped-VMEM request: large enough for the chosen tiles (v5e's default is
    # only 16 MiB), comfortably below the chip's physical capacity.
    need = (2 * d_hid * tn * 2 + d_emb * d_hid * 2 + Bp * d_emb * 2
            + 2 * d_hid * 4 + 2 * Bp * tn * 4 + 2 * tn * 4)
    vmem_limit = int(min(max(need + (2 << 20), 16 << 20), (vmem_cap * 3) // 4))

    cost = pl.CostEstimate(
        flops=2 * Bp * d_emb * d_hid * n_tiles + 2 * Bp * d_hid * d_hid,
        transcendentals=Bp * d_hid * n_tiles,
        bytes_accessed=(t.size * 2 + w1.size * 2 + w2.size * 2
                        + b1.size * 4 + b2.size * 4 + Bp * d_hid * 4),
    )

    out = pl.pallas_call(
        time_embedding_kernel,
        out_shape=jax.ShapeDtypeStruct((Bp, d_hid), out_dtype),
        grid=(n_tiles,),
        in_specs=[
            pl.BlockSpec((Bp, d_emb),    lambda j: (0, 0)),   # time (resident)
            pl.BlockSpec((d_emb, d_hid), lambda j: (0, 0)),   # w1   (resident)
            pl.BlockSpec((1, d_hid),     lambda j: (0, 0)),   # b1   (resident)
            pl.BlockSpec((d_hid, tn),    lambda j: (0, j)),   # w2   N-tile (dominant)
            pl.BlockSpec((1, tn),        lambda j: (0, j)),   # b2   N-tile
        ],
        out_specs=pl.BlockSpec((Bp, tn), lambda j: (0, j)),
        compiler_params=pltpu.CompilerParams(
            dimension_semantics=("parallel",),
            vmem_limit_bytes=vmem_limit),
        cost_estimate=cost,
    )(t, w1, b1, w2, b2)

    return out[:B]


# ----------------------------------------------------------------------------
# Reference + self-test
# ----------------------------------------------------------------------------
def _reference(time, w1, b1, w2, b2):
    h = time @ w1 + b1
    h = h * jax.nn.sigmoid(h)
    return h @ w2 + b2


if __name__ == "__main__":
    key = jax.random.PRNGKey(0)
    B, d_emb = 2, 32                       # small shapes consistent with the module
    d_hid = 4 * d_emb

    k_t, k_w1, k_b1, k_w2, k_b2 = jax.random.split(key, 5)
    time_in = jax.random.normal(k_t, (B, d_emb), dtype=jnp.float32)
    # Synthetic params, already in (in_features, out_features) layout.
    w1 = jax.random.normal(k_w1, (d_emb, d_hid), dtype=jnp.float32) * 0.05
    b1 = jax.random.normal(k_b1, (d_hid,), dtype=jnp.float32) * 0.05
    w2 = jax.random.normal(k_w2, (d_hid, d_hid), dtype=jnp.float32) * 0.05
    b2 = jax.random.normal(k_b2, (d_hid,), dtype=jnp.float32) * 0.05

    # One-time parameter prep (bf16 weights); the forward path does no casts.
    params = prepare_time_embedding_params(w1, b1, w2, b2)

    out = time_embedding(time_in, params)
    out = jax.block_until_ready(out)
    assert out.shape == (B, d_hid)

    # Reference with bf16-rounded time/weights (the kernel streams them in
    # bf16); tolerance relaxed accordingly for the bf16 activation cast.
    t_q = time_in.astype(jnp.bfloat16).astype(jnp.float32)
    w1_q = w1.astype(jnp.bfloat16).astype(jnp.float32)
    w2_q = w2.astype(jnp.bfloat16).astype(jnp.float32)
    ref = _reference(t_q, w1_q, b1, w2_q, b2)
    assert jnp.allclose(out, ref, atol=2e-2, rtol=2e-2), "mismatch vs reference"

    print("KERNEL_OK")
</pallas_src>

<mosaic_0001>
module attributes {stable_mosaic.version = 11 : i64} {
  func.func @time_embedding_kernel(%arg0: i32, %arg1: memref<8x32xbf16, #tpu.memory_space<vmem>>, %arg2: memref<32x128xbf16, #tpu.memory_space<vmem>>, %arg3: memref<1x128xf32, #tpu.memory_space<vmem>>, %arg4: memref<128x128xbf16, #tpu.memory_space<vmem>>, %arg5: memref<1x128xf32, #tpu.memory_space<vmem>>, %arg6: memref<8x128xf32, #tpu.memory_space<vmem>>) attributes {dimension_semantics = [#tpu.dimension_semantics<parallel>], iteration_bounds = array<i64: 1>, scalar_prefetch = 0 : i64, scratch_operands = 0 : i64, tpu.core_type = #tpu.core_type<tc>, window_params = [{pipeline_mode = #tpu.pipeline_mode<synchronous>, transform_indices = @transform_0, window_bounds = array<i64: 8, 32>}, {pipeline_mode = #tpu.pipeline_mode<synchronous>, transform_indices = @transform_1, window_bounds = array<i64: 32, 128>}, {pipeline_mode = #tpu.pipeline_mode<synchronous>, transform_indices = @transform_2, window_bounds = array<i64: 1, 128>}, {transform_indices = @transform_3, window_bounds = array<i64: 128, 128>}, {transform_indices = @transform_4, window_bounds = array<i64: 1, 128>}, {transform_indices = @transform_5, window_bounds = array<i64: 8, 128>}]} {
    %c0 = arith.constant 0 : index
    %c0_0 = arith.constant 0 : index
    %0 = vector.load %arg1[%c0, %c0_0] : memref<8x32xbf16, #tpu.memory_space<vmem>>, vector<8x32xbf16>
    %c0_1 = arith.constant 0 : index
    %c0_2 = arith.constant 0 : index
    %1 = vector.load %arg2[%c0_1, %c0_2] : memref<32x128xbf16, #tpu.memory_space<vmem>>, vector<32x128xbf16>
    %cst = arith.constant dense<0.000000e+00> : vector<8x128xf32>
    %2 = tpu.matmul %0, %1, %cst {dimension_numbers = #tpu.dot_dimension_numbers<[1], [0], [0], [1], [0, 0, 1, 1], [], []>} : vector<8x32xbf16>, vector<32x128xbf16>, vector<8x128xf32> -> vector<8x128xf32>
    %c0_3 = arith.constant 0 : index
    %c0_4 = arith.constant 0 : index
    %3 = vector.load %arg3[%c0_3, %c0_4] : memref<1x128xf32, #tpu.memory_space<vmem>>, vector<1x128xf32>
    %4 = vector.broadcast %3 : vector<1x128xf32> to vector<8x128xf32>
    %5 = arith.addf %2, %4 : vector<8x128xf32>
    %6 = arith.negf %5 : vector<8x128xf32>
    %7 = math.exp %6 : vector<8x128xf32>
    %cst_5 = arith.constant 1.000000e+00 : f32
    %8 = vector.broadcast %cst_5 : f32 to vector<8x128xf32>
    %9 = arith.addf %8, %7 : vector<8x128xf32>
    %10 = arith.divf %8, %9 : vector<8x128xf32>
    %11 = arith.mulf %5, %10 : vector<8x128xf32>
    %12 = arith.truncf %11 : vector<8x128xf32> to vector<8x128xbf16>
    %c0_6 = arith.constant 0 : index
    %c0_7 = arith.constant 0 : index
    %13 = vector.load %arg4[%c0_6, %c0_7] : memref<128x128xbf16, #tpu.memory_space<vmem>>, vector<128x128xbf16>
    %cst_8 = arith.constant dense<0.000000e+00> : vector<8x128xf32>
    %14 = tpu.matmul %12, %13, %cst_8 {dimension_numbers = #tpu.dot_dimension_numbers<[1], [0], [0], [1], [0, 0, 1, 1], [], []>} : vector<8x128xbf16>, vector<128x128xbf16>, vector<8x128xf32> -> vector<8x128xf32>
    %c0_9 = arith.constant 0 : index
    %c0_10 = arith.constant 0 : index
    %15 = vector.load %arg5[%c0_9, %c0_10] : memref<1x128xf32, #tpu.memory_space<vmem>>, vector<1x128xf32>
    %16 = vector.broadcast %15 : vector<1x128xf32> to vector<8x128xf32>
    %17 = arith.addf %14, %16 : vector<8x128xf32>
    %c0_11 = arith.constant 0 : index
    %c0_12 = arith.constant 0 : index
    %18 = vector.load %arg6[%c0_11, %c0_12] : memref<8x128xf32, #tpu.memory_space<vmem>>, vector<8x128xf32>
    tpu.vector_store %arg6[%c0_11, %c0_12], %17 {strides = array<i32>} : memref<8x128xf32, #tpu.memory_space<vmem>>, vector<8x128xf32>,
    return
  }
  func.func @transform_0(%arg0: i32) -> (i32, i32) {
    %c0_i32 = arith.constant 0 : i32
    %c0_i32_0 = arith.constant 0 : i32
    %c0_i32_1 = arith.constant 0 : i32
    return %c0_i32, %c0_i32_0 : i32, i32
  }
  func.func @transform_1(%arg0: i32) -> (i32, i32) {
    %c0_i32 = arith.constant 0 : i32
    %c0_i32_0 = arith.constant 0 : i32
    %c0_i32_1 = arith.constant 0 : i32
    return %c0_i32, %c0_i32_0 : i32, i32
  }
  func.func @transform_2(%arg0: i32) -> (i32, i32) {
    %c0_i32 = arith.constant 0 : i32
    %c0_i32_0 = arith.constant 0 : i32
    %c0_i32_1 = arith.constant 0 : i32
    return %c0_i32, %c0_i32_0 : i32, i32
  }
  func.func @transform_3(%arg0: i32) -> (i32, i32) {
    %c0_i32 = arith.constant 0 : i32
    %c0_i32_0 = arith.constant 0 : i32
    return %c0_i32, %arg0 : i32, i32
  }
  func.func @transform_4(%arg0: i32) -> (i32, i32) {
    %c0_i32 = arith.constant 0 : i32
    %c0_i32_0 = arith.constant 0 : i32
    return %c0_i32, %arg0 : i32, i32
  }
  func.func @transform_5(%arg0: i32) -> (i32, i32) {
    %c0_i32 = arith.constant 0 : i32
    %c0_i32_0 = arith.constant 0 : i32
    return %c0_i32, %arg0 : i32, i32
  }
}

</mosaic_0001>

<llo_original>
// kernel: tpu_custom_call.1
$region0: #{tpu_custom_call.1}
  #allocation0 [shape = 'u32[]', space=smem, size = 0x4, offset = 0x4, fixed_abs, tag = 'smem constant byte address 0x4 - core index']
  #allocation1 [shape = 'u32[144,128]{1,0:T(1,128)}', space=vmem, size = 0x12000, scoped, tag = 'internal scratch']
  %s0 = inlined_call_operand.hbm [shape: bf16[8,32], index: 0, kind: input, shape index: {}]
  %s1 = inlined_call_operand.hbm [shape: bf16[32,128], index: 1, kind: input, shape index: {}]
  %s2 = inlined_call_operand.vmem [shape: f32[1,128], index: 2, kind: input, shape index: {}]
  %s3 = inlined_call_operand.hbm [shape: bf16[128,128], index: 3, kind: input, shape index: {}]
  %s4 = inlined_call_operand.vmem [shape: f32[1,128], index: 4, kind: input, shape index: {}]
  %s5 = inlined_call_operand.hbm [shape: f32[8,128], index: 5, kind: output, shape index: {}]
  %s6 = sld [smem:[#allocation0]]
  $region42: #{tpu_custom_call.1} parent=0
    _
  %s8 = ssub.s32 1, %s6
  %s9 = scalar_select 0, %s8, %s6
  $region1: #{tpu_custom_call.1} parent=0
    #allocation2 [shape = 'u8[2048]{0}', space=vmem, size = 0x800, scoped, tag = 'input window, operand 0, single buffered']
    #allocation3 [shape = 's32[1]{0}', space=sflag, size = 0x4, scoped, tag = 'scoped memory for tpu_custom_call.1']
    #allocation4 [shape = 's32[1]{0}', space=sflag, size = 0x4, scoped, tag = 'scoped memory for tpu_custom_call.1']
    #allocation5 [shape = 'u8[8192]{0}', space=vmem, size = 0x2000, scoped, tag = 'input window, operand 1, single buffered']
    #allocation6 [shape = 's32[1]{0}', space=sflag, size = 0x4, scoped, tag = 'scoped memory for tpu_custom_call.1']
    #allocation7 [shape = 'u8[32768]{0}', space=vmem, size = 0x8000, scoped, tag = 'input window, operand 3, single buffered']
    #allocation8 [shape = 'u8[4096]{0}', space=vmem, size = 0x1000, scoped, tag = 'output window, operand 0, single buffered']
    %10 = vsyncpa [#allocation3], 0
    %11 = vsyncpa [#allocation6], 0
    %12 = vsyncpa [#allocation4], 0
    // Predicated region
    $region2: #{tpu_custom_call.1} parent=1 // pred_check
      _
    $region3: #{tpu_custom_call.1} parent=1 // pred_check_branch
      %14 = sbr.rel (0) target = $region5
    $region4: #{tpu_custom_call.1} parent=1 // pred_region
      %s16 = ssub.s32 64, 64
      %17 = vsyncadd [#allocation3], %s16
      %s19 = sshll.u32 [#allocation2], 4
      %s20 = int_to_ptr.vmem [resolvable:$true] %s19
      %22 = dma.hbm_to_vmem [thread:$0]  %s0, 64, %s20, [#allocation3]
    $region5: #{tpu_custom_call.1} parent=1 // pred_fallthru
      _
    // Predicated region
    $region6: #{tpu_custom_call.1} parent=1 // pred_check
      _
    $region7: #{tpu_custom_call.1} parent=1 // pred_check_branch
      %24 = sbr.rel (0) target = $region9
    $region8: #{tpu_custom_call.1} parent=1 // pred_region
      %s26 = ssub.s32 256, 256
      %27 = vsyncadd [#allocation6], %s26
      %s28 = sshll.u32 [#allocation5], 4
      %s29 = int_to_ptr.vmem [resolvable:$true] %s28
      %34 = dma.hbm_to_vmem [thread:$0]  %s1, 256, %s29, [#allocation6], 64, 64, 4
    $region9: #{tpu_custom_call.1} parent=1 // pred_fallthru
      _
    // Predicated region
    $region10: #{tpu_custom_call.1} parent=1 // pred_check
      _
    $region11: #{tpu_custom_call.1} parent=1 // pred_check_branch
      %36 = sbr.rel (0) target = $region13
    $region12: #{tpu_custom_call.1} parent=1 // pred_region
      _
    $region13: #{tpu_custom_call.1} parent=1 // pred_fallthru
      _
    // Predicated region
    $region14: #{tpu_custom_call.1} parent=1 // pred_check
      _
    $region15: #{tpu_custom_call.1} parent=1 // pred_check_branch
      %38 = sbr.rel (0) target = $region17
    $region16: #{tpu_custom_call.1} parent=1 // pred_region
      %s40 = ssub.s32 1024, 1024
      %41 = vsyncadd [#allocation6], %s40
      %s42 = sshll.u32 [#allocation7], 4
      %s43 = int_to_ptr.vmem [resolvable:$true] %s42
      %48 = dma.hbm_to_vmem [thread:$0]  %s3, 1024, %s43, [#allocation6], 64, 64, 4
    $region17: #{tpu_custom_call.1} parent=1 // pred_fallthru
      _
    // Predicated region
    $region18: #{tpu_custom_call.1} parent=1 // pred_check
      _
    $region19: #{tpu_custom_call.1} parent=1 // pred_check_branch
      %50 = sbr.rel (0) target = $region21
    $region20: #{tpu_custom_call.1} parent=1 // pred_region
      _
    $region21: #{tpu_custom_call.1} parent=1 // pred_fallthru
      _
    // Predicated region
    $region22: #{tpu_custom_call.1} parent=1 // pred_check
      _
    $region23: #{tpu_custom_call.1} parent=1 // pred_check_branch
      %52 = sbr.rel (0) target = $region25
    $region24: #{tpu_custom_call.1} parent=1 // pred_region
      %53 = dma.done [#allocation3], 64
    $region25: #{tpu_custom_call.1} parent=1 // pred_fallthru
      _
    // Predicated region
    $region26: #{tpu_custom_call.1} parent=1 // pred_check
      _
    $region27: #{tpu_custom_call.1} parent=1 // pred_check_branch
      %55 = sbr.rel (0) target = $region29
    $region28: #{tpu_custom_call.1} parent=1 // pred_region
      %56 = dma.done [#allocation6], 256
    $region29: #{tpu_custom_call.1} parent=1 // pred_fallthru
      _
    // Predicated region
    $region30: #{tpu_custom_call.1} parent=1 // pred_check
      _
    $region31: #{tpu_custom_call.1} parent=1 // pred_check_branch
      %58 = sbr.rel (0) target = $region33
    $region32: #{tpu_custom_call.1} parent=1 // pred_region
      %59 = dma.done [#allocation6], 1024
    $region33: #{tpu_custom_call.1} parent=1 // pred_fallthru
      _
    %v61 = vld [vmem:[#allocation2] sm:$0xf]
    %v62 = vld [vmem:[#allocation5] sm:$0xf]
    %v63 = vld [vmem:[#allocation5 + $0x4] sm:$0xf]
    %v64 = vld [vmem:[#allocation5 + $0x8] sm:$0xf]
    %v65 = vld [vmem:[#allocation5 + $0xc] sm:$0xf]
    %v66 = vld [vmem:[%s2] sm:$0x1]
    %v68 = vlaneseq
    %v69 = vshrl.u32 %v68, 7
    %v70 = vsub.s32 0, %v69
    %v71 = vrot.slane %v66, %v70
    %v77 = vunpack.c.l.b16 %v62
    %v78 = vunpack.c.l.b16 %v63
    %v79 = vunpack.c.l.b16 %v64
    %v80 = vunpack.c.l.b16 %v65
    %v81 = vpack.c.b16 %v78, %v77
    %v82 = vpack.c.b16 %v80, %v79
    %vm85 = vcmask 261120
    %v87 = vsel %vm85, %v61, 0
    %89 = vmatprep.subr.bf16.mxu0 0
    %90 = vmatpush1.bf16.msra.mxu0 %v81
    %91 = vmatprep.subr.bf16.mxu0 0
    %92 = vmatpush1.bf16.msra.mxu0 %v82
    %93 = vmatprep.subr.bf16.mxu0 0
    %94 = vmatpush1.bf16.msra.mxu0 0
    %95 = vmatprep.subr.bf16.mxu0 0
    %96 = vmatpush1.bf16.msra.mxu0 0
    %97 = vmatprep.subr.bf16.mxu0 0
    %98 = vmatpush1.bf16.msra.mxu0 0
    %99 = vmatprep.subr.bf16.mxu0 0
    %100 = vmatpush1.bf16.msra.mxu0 0
    %101 = vmatprep.subr.bf16.mxu0 0
    %102 = vmatpush1.bf16.msra.mxu0 0
    %103 = vmatprep.subr.bf16.mxu0 0
    %104 = vmatpush1.bf16.msra.mxu0 0
    %105 = vmatprep.subr.bf16.mxu0 0
    %106 = vmatpush1.bf16.msra.mxu0 0
    %107 = vmatprep.subr.bf16.mxu0 0
    %108 = vmatpush1.bf16.msra.mxu0 0
    %109 = vmatprep.subr.bf16.mxu0 0
    %110 = vmatpush1.bf16.msra.mxu0 0
    %111 = vmatprep.subr.bf16.mxu0 0
    %112 = vmatpush1.bf16.msra.mxu0 0
    %113 = vmatprep.subr.bf16.mxu0 0
    %114 = vmatpush1.bf16.msra.mxu0 0
    %115 = vmatprep.subr.bf16.mxu0 0
    %116 = vmatpush1.bf16.msra.mxu0 0
    %117 = vmatprep.subr.bf16.mxu0 0
    %118 = vmatpush1.bf16.msra.mxu0 0
    %119 = vmatprep.subr.bf16.mxu0 0
    %120 = vmatpush1.bf16.msra.mxu0 0
    %121 = vmatprep.mubr.bf16.mxu0 0
    %122 = vmatmul.mubr.bf16.gmra.mrb[0].mxu0 %v87
    %v123 = vpop.f32.mrb[0].mxu0
    %v124 = vadd.f32 %v71, %v123
    %v125 = vpop.f32.mrb[0].mxu0
    %v126 = vpop.f32.mrb[0].mxu0
    %v127 = vpop.f32.mrb[0].mxu0
    %128 = vdwg.mxu0
    %v129 = vxor.u32 %v124, 2147483648
    %v130 = vmul.f32 %v129, 1.442695
    %v131 = vpow.pop %v130
    %v132 = vadd.f32 %v131, 1.0
    %v133 = vrcp.pop %v132
    %v134 = vmul.f32 1.0, %v133
    %v135 = vmul.f32 %v124, %v134
    %v136 = vpack.c.bf16 %v135, %v135
    %v137 = vld [vmem:[#allocation7] sm:$0xf]
    %v138 = vld [vmem:[#allocation7 + $0x4] sm:$0xf]
    %v139 = vld [vmem:[#allocation7 + $0x8] sm:$0xf]
    %v140 = vld [vmem:[#allocation7 + $0xc] sm:$0xf]
    %v141 = vld [vmem:[#allocation7 + $0x10] sm:$0xf]
    %v142 = vld [vmem:[#allocation7 + $0x14] sm:$0xf]
    %v143 = vld [vmem:[#allocation7 + $0x18] sm:$0xf]
    %v144 = vld [vmem:[#allocation7 + $0x1c] sm:$0xf]
    %v145 = vld [vmem:[#allocation7 + $0x20] sm:$0xf]
    %v146 = vld [vmem:[#allocation7 + $0x24] sm:$0xf]
    %v147 = vld [vmem:[#allocation7 + $0x28] sm:$0xf]
    %v148 = vld [vmem:[#allocation7 + $0x2c] sm:$0xf]
    %v149 = vld [vmem:[#allocation7 + $0x30] sm:$0xf]
    %v150 = vld [vmem:[#allocation7 + $0x34] sm:$0xf]
    %v151 = vld [vmem:[#allocation7 + $0x38] sm:$0xf]
    %v152 = vld [vmem:[#allocation7 + $0x3c] sm:$0xf]
    %v153 = vld [vmem:[%s4] sm:$0x1]
    %v155 = vlaneseq
    %v156 = vshrl.u32 %v155, 7
    %v157 = vsub.s32 0, %v156
    %v158 = vrot.slane %v153, %v157
    %v176 = vunpack.c.l.b16 %v137
    %v177 = vunpack.c.l.b16 %v138
    %v178 = vunpack.c.l.b16 %v139
    %v179 = vunpack.c.l.b16 %v140
    %v180 = vunpack.c.l.b16 %v141
    %v181 = vunpack.c.l.b16 %v142
    %v182 = vunpack.c.l.b16 %v143
    %v183 = vunpack.c.l.b16 %v144
    %v184 = vunpack.c.l.b16 %v145
    %v185 = vunpack.c.l.b16 %v146
    %v186 = vunpack.c.l.b16 %v147
    %v187 = vunpack.c.l.b16 %v148
    %v188 = vunpack.c.l.b16 %v149
    %v189 = vunpack.c.l.b16 %v150
    %v190 = vunpack.c.l.b16 %v151
    %v191 = vunpack.c.l.b16 %v152
    %v192 = vpack.c.b16 %v177, %v176
    %v193 = vpack.c.b16 %v179, %v178
    %v194 = vpack.c.b16 %v181, %v180
    %v195 = vpack.c.b16 %v183, %v182
    %v196 = vpack.c.b16 %v185, %v184
    %v197 = vpack.c.b16 %v187, %v186
    %v198 = vpack.c.b16 %v189, %v188
    %v199 = vpack.c.b16 %v191, %v190
    %208 = vmatprep.subr.bf16.mxu0 0
    %209 = vmatpush1.bf16.msra.mxu0 %v192
    %210 = vmatprep.subr.bf16.mxu0 0
    %211 = vmatpush1.bf16.msra.mxu0 %v193
    %212 = vmatprep.subr.bf16.mxu0 0
    %213 = vmatpush1.bf16.msra.mxu0 %v194
    %214 = vmatprep.subr.bf16.mxu0 0
    %215 = vmatpush1.bf16.msra.mxu0 %v195
    %216 = vmatprep.subr.bf16.mxu0 0
    %217 = vmatpush1.bf16.msra.mxu0 %v196
    %218 = vmatprep.subr.bf16.mxu0 0
    %219 = vmatpush1.bf16.msra.mxu0 %v197
    %220 = vmatprep.subr.bf16.mxu0 0
    %221 = vmatpush1.bf16.msra.mxu0 %v198
    %222 = vmatprep.subr.bf16.mxu0 0
    %223 = vmatpush1.bf16.msra.mxu0 %v199
    %224 = vmatprep.subr.bf16.mxu0 0
    %225 = vmatpush1.bf16.msra.mxu0 0
    %226 = vmatprep.subr.bf16.mxu0 0
    %227 = vmatpush1.bf16.msra.mxu0 0
    %228 = vmatprep.subr.bf16.mxu0 0
    %229 = vmatpush1.bf16.msra.mxu0 0
    %230 = vmatprep.subr.bf16.mxu0 0
    %231 = vmatpush1.bf16.msra.mxu0 0
    %232 = vmatprep.subr.bf16.mxu0 0
    %233 = vmatpush1.bf16.msra.mxu0 0
    %234 = vmatprep.subr.bf16.mxu0 0
    %235 = vmatpush1.bf16.msra.mxu0 0
    %236 = vmatprep.subr.bf16.mxu0 0
    %237 = vmatpush1.bf16.msra.mxu0 0
    %238 = vmatprep.subr.bf16.mxu0 0
    %239 = vmatpush1.bf16.msra.mxu0 0
    %240 = vmatprep.mubr.bf16.mxu0 0
    %241 = vmatmul.mubr.bf16.gmra.mrb[0].mxu0 %v136
    %v242 = vpop.f32.mrb[0].mxu0
    %v243 = vadd.f32 %v158, %v242
    %v244 = vpop.f32.mrb[0].mxu0
    %v245 = vpop.f32.mrb[0].mxu0
    %v246 = vpop.f32.mrb[0].mxu0
    %247 = vdwg.mxu0
    %248 = vst [vmem:[#allocation8] sm:$0xff] %v243
    // Predicated region
    $region34: #{tpu_custom_call.1} parent=1 // pred_check
      _
    $region35: #{tpu_custom_call.1} parent=1 // pred_check_branch
      %250 = sbr.rel (0) target = $region37
    $region36: #{tpu_custom_call.1} parent=1 // pred_region
      %s252 = ssub.s32 128, 128
      %253 = vsyncadd [#allocation4], %s252
      %s255 = sshll.u32 [#allocation8], 4
      %s256 = int_to_ptr.vmem [resolvable:$true] %s255
      %258 = dma.vmem_to_hbm [thread:$0]  %s256, 128, %s5, [#allocation4]
    $region37: #{tpu_custom_call.1} parent=1 // pred_fallthru
      _
    // Predicated region
    $region38: #{tpu_custom_call.1} parent=1 // pred_check
      _
    $region39: #{tpu_custom_call.1} parent=1 // pred_check_branch
      %260 = sbr.rel (0) target = $region41
    $region40: #{tpu_custom_call.1} parent=1 // pred_region
      %261 = dma.done [#allocation4], 128
    $region41: #{tpu_custom_call.1} parent=1 // pred_fallthru
      _
    %262 = vsyncpa [#allocation3], 1
    %263 = vsyncpa [#allocation6], 1
    %264 = vsyncpa [#allocation4], 1

</llo_original>
